<compile_context>
chip_gen: v6e
topology: v6e:2x2x1
jax: 0.10.0
libtpu: 0.0.40
codegen_flags: <defaults>
</compile_context>

<pallas_src>
import jax
import jax.numpy as jnp
from jax.experimental import pallas as pl
from jax.experimental.pallas import tpu as pltpu


def linear_kernel(x_ref, w_ref, b_ref, o_ref):
    # x_ref: (tile_b, 20) VMEM tile
    # w_ref: (20, 1)      VMEM resident column (natural MXU RHS layout)
    # b_ref: (1,)         SMEM scalar
    # o_ref: (tile_b, 1)  VMEM output tile
    acc = jnp.dot(x_ref[...], w_ref[...],
                  preferred_element_type=jnp.float32)      # MXU, (tile_b, 1) f32
    o_ref[...] = (acc + b_ref[0]).astype(o_ref.dtype)


def _select_tile_b(B):
    """Batch tile: multiple of 8, sized per TPU generation's VMEM budget."""
    if B <= 8:
        return B  # full-dim block is always legal
    try:
        kind = jax.devices()[0].device_kind.lower()
    except Exception:
        kind = ""
    if "v5 lite" in kind or "v5e" in kind:
        cap = 4096   # v5e: 16 MiB scoped default -> 8 MiB of buffers at 4096
    else:
        cap = 8192   # v6e/v7x: ~16 MiB of buffers, inside 32 MiB scoped default
    if "v7" in kind and B >= 32:
        # Keep >= ~4 grid steps so the "parallel" axis shards across both TCs.
        cap = min(cap, max(8, (B // 4 // 8) * 8))
    tile_b = min(B, cap)
    tile_b = max(8, (tile_b // 8) * 8)
    return tile_b


def model_part2_forward(x, weight, bias, *, tile_b=None):
    """x: (B, 20) f32, weight: (1, 20) f32 (PyTorch layout), bias: (1,) f32."""
    B, in_f = x.shape
    out_f = weight.shape[0]

    if tile_b is None:
        tile_b = _select_tile_b(B)
    grid = (pl.cdiv(B, tile_b),)   # ragged edge block handled by Pallas masking

    # One-time 80-byte transpose so the kernel can feed the MXU directly.
    w_col = weight.T                                        # (20, 1)

    return pl.pallas_call(
        linear_kernel,
        out_shape=jax.ShapeDtypeStruct((B, out_f), x.dtype),
        grid=grid,
        in_specs=[
            pl.BlockSpec((tile_b, in_f), lambda i: (i, 0)),   # x: tiled over batch
            pl.BlockSpec((in_f, out_f), lambda i: (0, 0)),    # weight column: resident
            pl.BlockSpec(memory_space=pltpu.SMEM),            # bias: SMEM scalar
        ],
        out_specs=pl.BlockSpec((tile_b, out_f), lambda i: (i, 0)),
        compiler_params=pltpu.CompilerParams(
            dimension_semantics=("parallel",),  # megacore sharding on v7x
        ),
    )(x, w_col, bias)


if __name__ == "__main__":
    key = jax.random.PRNGKey(0)
    kx, kw, kb = jax.random.split(key, 3)

    B, IN, OUT = 8, 20, 1
    x = jax.random.normal(kx, (B, IN), dtype=jnp.float32)

    # Deterministic parameter init (mimics PyTorch's uniform(-1/sqrt(in), 1/sqrt(in)))
    bound = 1.0 / (IN ** 0.5)
    weight = jax.random.uniform(kw, (OUT, IN), minval=-bound, maxval=bound,
                                dtype=jnp.float32)
    bias = jax.random.uniform(kb, (OUT,), minval=-bound, maxval=bound,
                              dtype=jnp.float32)

    y = model_part2_forward(x, weight, bias)
    jax.block_until_ready(y)

    # Correctness check against plain-JAX reference.
    y_ref = x @ weight.T + bias
    assert y.shape == (B, OUT)
    assert jnp.allclose(y, y_ref, atol=1e-5, rtol=1e-5), "mismatch vs reference"

    print("KERNEL_OK")
</pallas_src>

<mosaic_0001>
module attributes {stable_mosaic.version = 11 : i64} {
  func.func @linear_kernel(%arg0: i32, %arg1: memref<8x20xf32, #tpu.memory_space<vmem>>, %arg2: memref<20x1xf32, #tpu.memory_space<vmem>>, %arg3: memref<1xf32, #tpu.memory_space<smem>>, %arg4: memref<8x1xf32, #tpu.memory_space<vmem>>) attributes {dimension_semantics = [#tpu.dimension_semantics<parallel>], iteration_bounds = array<i64: 1>, scalar_prefetch = 0 : i64, scratch_operands = 0 : i64, tpu.core_type = #tpu.core_type<tc>, window_params = [{transform_indices = @transform_0, window_bounds = array<i64: 8, 20>}, {pipeline_mode = #tpu.pipeline_mode<synchronous>, transform_indices = @transform_1, window_bounds = array<i64: 20, 1>}, {transform_indices = @transform_2, window_bounds = array<i64: 1>}, {transform_indices = @transform_3, window_bounds = array<i64: 8, 1>}]} {
    %c0 = arith.constant 0 : index
    %c0_0 = arith.constant 0 : index
    %0 = vector.load %arg1[%c0, %c0_0] : memref<8x20xf32, #tpu.memory_space<vmem>>, vector<8x20xf32>
    %c0_1 = arith.constant 0 : index
    %c0_2 = arith.constant 0 : index
    %1 = vector.load %arg2[%c0_1, %c0_2] : memref<20x1xf32, #tpu.memory_space<vmem>>, vector<20x1xf32>
    %cst = arith.constant dense<0.000000e+00> : vector<8x1xf32>
    %2 = tpu.matmul %0, %1, %cst {dimension_numbers = #tpu.dot_dimension_numbers<[1], [0], [0], [1], [0, 0, 1, 1], [], []>} : vector<8x20xf32>, vector<20x1xf32>, vector<8x1xf32> -> vector<8x1xf32>
    %c0_3 = arith.constant 0 : index
    %3 = memref.load %arg3[%c0_3] : memref<1xf32, #tpu.memory_space<smem>>
    %4 = vector.broadcast %3 : f32 to vector<8x1xf32>
    %5 = arith.addf %2, %4 : vector<8x1xf32>
    %c0_4 = arith.constant 0 : index
    %c0_5 = arith.constant 0 : index
    %6 = vector.load %arg4[%c0_4, %c0_5] : memref<8x1xf32, #tpu.memory_space<vmem>>, vector<8x1xf32>
    tpu.vector_store %arg4[%c0_4, %c0_5], %5 {strides = array<i32>} : memref<8x1xf32, #tpu.memory_space<vmem>>, vector<8x1xf32>,
    return
  }
  func.func @transform_0(%arg0: i32) -> (i32, i32) {
    %c0_i32 = arith.constant 0 : i32
    %c0_i32_0 = arith.constant 0 : i32
    return %arg0, %c0_i32 : i32, i32
  }
  func.func @transform_1(%arg0: i32) -> (i32, i32) {
    %c0_i32 = arith.constant 0 : i32
    %c0_i32_0 = arith.constant 0 : i32
    %c0_i32_1 = arith.constant 0 : i32
    return %c0_i32, %c0_i32_0 : i32, i32
  }
  func.func @transform_2(%arg0: i32) -> i32 {
    %c0_i32 = arith.constant 0 : i32
    %c0_i32_0 = arith.constant 0 : i32
    return %c0_i32 : i32
  }
  func.func @transform_3(%arg0: i32) -> (i32, i32) {
    %c0_i32 = arith.constant 0 : i32
    %c0_i32_0 = arith.constant 0 : i32
    return %arg0, %c0_i32 : i32, i32
  }
}

</mosaic_0001>

<llo_original>
// kernel: tpu_custom_call.1
$region0: #{tpu_custom_call.1}
  #allocation0 [shape = 'u32[]', space=smem, size = 0x4, offset = 0x4, fixed_abs, tag = 'smem constant byte address 0x4 - core index']
  #allocation1 [shape = 'u32[144,128]{1,0:T(1,128)}', space=vmem, size = 0x12000, scoped, tag = 'internal scratch']
  #allocation2 [shape = 'f32[1]{0:T(128)S(6)}', space=smem, size = 0x200, scoped, tag = 'scoped memory for tpu_custom_call.1']
  %s0 = inlined_call_operand.vmem [shape: f32[8,20], index: 0, kind: input, shape index: {}]
  %s1 = inlined_call_operand.vmem [shape: f32[20,1], index: 1, kind: input, shape index: {}]
  %s2 = inlined_call_operand.<no memory space> [shape: f32[1], index: 2, kind: input, shape index: {}]
  %s3 = inlined_call_operand.vmem [shape: f32[8,1], index: 3, kind: output, shape index: {}]
  %s4 = sld [smem:[#allocation0]]
  $region22: #{tpu_custom_call.1} parent=0
    _
  %s6 = ssub.s32 1, %s4
  %s7 = scalar_select 0, %s6, %s4
  %8 = sst [smem:[#allocation2]] %s2
  // Predicated region
  $region2: #{tpu_custom_call.1} parent=0 // pred_check
    _
  $region3: #{tpu_custom_call.1} parent=0 // pred_check_branch
    %10 = sbr.rel (0) target = $region5
  $region4: #{tpu_custom_call.1} parent=0 // pred_region
    _
  $region5: #{tpu_custom_call.1} parent=0 // pred_fallthru
    _
  // Predicated region
  $region6: #{tpu_custom_call.1} parent=0 // pred_check
    _
  $region7: #{tpu_custom_call.1} parent=0 // pred_check_branch
    %12 = sbr.rel (0) target = $region9
  $region8: #{tpu_custom_call.1} parent=0 // pred_region
    _
  $region9: #{tpu_custom_call.1} parent=0 // pred_fallthru
    _
  // Predicated region
  $region10: #{tpu_custom_call.1} parent=0 // pred_check
    _
  $region11: #{tpu_custom_call.1} parent=0 // pred_check_branch
    %14 = sbr.rel (0) target = $region13
  $region12: #{tpu_custom_call.1} parent=0 // pred_region
    _
  $region13: #{tpu_custom_call.1} parent=0 // pred_fallthru
    _
  %v15 = vld [vmem:[%s0] sm:$0xff]
  %v16 = vld [vmem:[%s1] sm:$0xff]
  %v17 = vld [vmem:[%s1 + $0x8] sm:$0xff]
  %v18 = vld [vmem:[%s1 + $0x10] sm:$0xf]
  %s19 = sld [smem:[#allocation2]]
  %v20 = vstv %s19
  %vm21 = vcmask 162816
  %v23 = vsel %vm21, %v15, 0
  %vm25 = vcmask 1043456
  %v27 = vsel %vm25, %v18, 0
  %29 = vmatprep.subr.mxu0 0.0
  %30 = vmatpush1.msra.mxu0 0.0
  %31 = vmatprep.subr.mxu0 0.0
  %32 = vmatpush1.msra.mxu0 0.0
  %33 = vmatprep.subr.mxu0 0.0
  %34 = vmatpush1.msra.mxu0 0.0
  %35 = vmatprep.subr.mxu0 0.0
  %36 = vmatpush1.msra.mxu0 0.0
  %37 = vmatprep.subr.mxu0 0.0
  %38 = vmatpush1.msra.mxu0 0.0
  %39 = vmatprep.subr.mxu0 0.0
  %40 = vmatpush1.msra.mxu0 0.0
  %41 = vmatprep.subr.mxu0 0.0
  %42 = vmatpush1.msra.mxu0 0.0
  %43 = vmatprep.subr.mxu0 0.0
  %44 = vmatpush1.msra.mxu0 0.0
  %45 = vmatprep.subr.mxu0 0.0
  %46 = vmatpush1.msra.mxu0 0.0
  %47 = vmatprep.subr.mxu0 0.0
  %48 = vmatpush1.msra.mxu0 0.0
  %49 = vmatprep.subr.mxu0 0.0
  %50 = vmatpush1.msra.mxu0 0.0
  %51 = vmatprep.subr.mxu0 0.0
  %52 = vmatpush1.msra.mxu0 0.0
  %53 = vmatprep.subr.mxu0 0.0
  %54 = vmatpush1.msra.mxu0 0.0
  %55 = vmatprep.subr.mxu0 0.0
  %56 = vmatpush1.msra.mxu0 %v27
  %57 = vmatprep.subr.mxu0 0.0
  %58 = vmatpush1.msra.mxu0 %v17
  %59 = vmatprep.subr.mxu0 0.0
  %60 = vmatpush1.msra.mxu0 %v16
  %61 = vmatprep.subr.mxu0 0.0
  %62 = vmatpush2.msra.mxu0 0.0
  %63 = vmatprep.subr.mxu0 0.0
  %64 = vmatpush2.msra.mxu0 0.0
  %65 = vmatprep.subr.mxu0 0.0
  %66 = vmatpush2.msra.mxu0 0.0
  %67 = vmatprep.subr.mxu0 0.0
  %68 = vmatpush2.msra.mxu0 0.0
  %69 = vmatprep.subr.mxu0 0.0
  %70 = vmatpush2.msra.mxu0 0.0
  %71 = vmatprep.subr.mxu0 0.0
  %72 = vmatpush2.msra.mxu0 0.0
  %73 = vmatprep.subr.mxu0 0.0
  %74 = vmatpush2.msra.mxu0 0.0
  %75 = vmatprep.subr.mxu0 0.0
  %76 = vmatpush2.msra.mxu0 0.0
  %77 = vmatprep.subr.mxu0 0.0
  %78 = vmatpush2.msra.mxu0 0.0
  %79 = vmatprep.subr.mxu0 0.0
  %80 = vmatpush2.msra.mxu0 0.0
  %81 = vmatprep.subr.mxu0 0.0
  %82 = vmatpush2.msra.mxu0 0.0
  %83 = vmatprep.subr.mxu0 0.0
  %84 = vmatpush2.msra.mxu0 0.0
  %85 = vmatprep.subr.mxu0 0.0
  %86 = vmatpush2.msra.mxu0 0.0
  %87 = vmatprep.subr.mxu0 0.0
  %88 = vmatpush2.msra.mxu0 0.0
  %89 = vmatprep.subr.mxu0 0.0
  %90 = vmatpush2.msra.mxu0 0.0
  %91 = vmatprep.subr.mxu0 0.0
  %92 = vmatpush2.msra.mxu0 0.0
  %93 = vmatprep.mubr.f32.mxu0 0.0
  %94 = vmatmul.mubr.f32.gmra.mxu0 %v23
  %v95 = vpop.f32.mrf.mxu0
  %v96 = vadd.f32 %v20, %v95
  %v97 = vpop.f32.mrf.mxu0
  %98 = vdwg.mxu0
  %vm99 = vcmask 7168
  %100 = vst.msk [vmem:[%s3] sm:$0xff] %vm99, %v96
  // Predicated region
  $region14: #{tpu_custom_call.1} parent=0 // pred_check
    _
  $region15: #{tpu_custom_call.1} parent=0 // pred_check_branch
    %102 = sbr.rel (0) target = $region17
  $region16: #{tpu_custom_call.1} parent=0 // pred_region
    _
  $region17: #{tpu_custom_call.1} parent=0 // pred_fallthru
    _
  // Predicated region
  $region18: #{tpu_custom_call.1} parent=0 // pred_check
    _
  $region19: #{tpu_custom_call.1} parent=0 // pred_check_branch
    %104 = sbr.rel (0) target = $region21
  $region20: #{tpu_custom_call.1} parent=0 // pred_region
    _
  $region21: #{tpu_custom_call.1} parent=0 // pred_fallthru
    _

</llo_original>
